<compile_context>
chip_gen: v7x
topology: tpu7x:2x2x1
jax: 0.10.0
libtpu: 0.0.40
codegen_flags: <defaults>
</compile_context>

<pallas_src>
import math
import jax
import jax.numpy as jnp
from jax.experimental import pallas as pl
from jax.experimental.pallas import tpu as pltpu

INPUT_DIM = 600
OUTPUT_DIM = 128


def sparse_linear_kernel(x_ref, wT_ref, b_ref, o_ref):
    # x_ref:  (TM, D_in)    batch tile
    # wT_ref: (D_in, D_out) resident across all grid steps
    # b_ref:  (1, D_out)    resident across all grid steps
    # o_ref:  (TM, D_out)
    acc = jnp.dot(x_ref[...], wT_ref[...], preferred_element_type=jnp.float32)
    o_ref[...] = (acc + b_ref[...]).astype(o_ref.dtype)


def _pick_batch_tile(batch):
    """Multiple of 8, capped at 1024 (fits scoped-VMEM defaults on v5e/v6e/v7x)."""
    tm = ((batch + 7) // 8) * 8
    return min(tm, 1024)


def sparse_linear(x, wT, bias2d, *, tm=None):
    """x: (B, D_in) f32; wT: (D_in, D_out) f32 (pre-transposed); bias2d: (1, D_out)."""
    B, D_in = x.shape
    D_out = wT.shape[1]
    if tm is None:
        tm = _pick_batch_tile(B)
    grid = (pl.cdiv(B, tm),)

    return pl.pallas_call(
        sparse_linear_kernel,
        out_shape=jax.ShapeDtypeStruct((B, D_out), x.dtype),
        grid_spec=pltpu.PrefetchScalarGridSpec(
            num_scalar_prefetch=0,
            grid=grid,
            in_specs=[
                pl.BlockSpec((tm, D_in), lambda i: (i, 0)),     # batch tile moves
                pl.BlockSpec((D_in, D_out), lambda i: (0, 0)),  # weight resident
                pl.BlockSpec((1, D_out), lambda i: (0, 0)),     # bias resident
            ],
            out_specs=pl.BlockSpec((tm, D_out), lambda i: (i, 0)),
        ),
        compiler_params=pltpu.CompilerParams(
            # Batch tiles are independent -> parallel (shards across v7x's 2 TCs).
            dimension_semantics=("parallel",),
        ),
    )(x, wT, bias2d)


def init_params(key, input_dim, output_dim):
    """Deterministic init mirroring nn.init.kaiming_uniform_(a=sqrt(5)) + uniform bias.

    Returns the weight already transposed to (D_in, D_out) and bias as (1, D_out)
    so no per-call transpose/reshape is emitted under jit.
    """
    kw, kb = jax.random.split(key)
    fan_in = input_dim
    gain = math.sqrt(2.0 / (1.0 + 5.0))          # a = sqrt(5)
    w_bound = gain * math.sqrt(3.0 / fan_in)
    weight = jax.random.uniform(
        kw, (output_dim, input_dim), jnp.float32, -w_bound, w_bound)
    b_bound = 1.0 / math.sqrt(fan_in)
    bias = jax.random.uniform(
        kb, (output_dim,), jnp.float32, -b_bound, b_bound)
    # Hoisted layout transforms (done once at init, not per forward call).
    wT = jnp.asarray(weight.T)                   # (D_in, D_out)
    bias2d = bias.reshape(1, output_dim)         # (1, D_out)
    return weight, bias, wT, bias2d


if __name__ == "__main__":
    key = jax.random.PRNGKey(0)
    k_x, k_x2, k_p = jax.random.split(key, 3)

    # TODO(synk): torch.sparse.mm takes a sparse COO input; here the input is a
    # dense array with identical numerics (sparsity is a storage optimization).
    weight, bias, wT, bias2d = init_params(k_p, INPUT_DIM, OUTPUT_DIM)

    # Case 1: small batch (matches the module's typical use).
    B = 8
    x = jax.random.normal(k_x, (B, INPUT_DIM), jnp.float32)
    out = jax.block_until_ready(sparse_linear(x, wT, bias2d))
    ref = x @ weight.T + bias
    assert out.shape == (B, OUTPUT_DIM)
    assert jnp.allclose(out, ref, atol=1e-4, rtol=1e-4)

    # Case 2: multi-step batch grid with a partial trailing tile (exercises the
    # batch tiling / double-buffered pipeline path).
    B2 = 40
    x2 = jax.random.normal(k_x2, (B2, INPUT_DIM), jnp.float32)
    out2 = jax.block_until_ready(sparse_linear(x2, wT, bias2d, tm=16))
    ref2 = x2 @ weight.T + bias
    assert out2.shape == (B2, OUTPUT_DIM)
    assert jnp.allclose(out2, ref2, atol=1e-4, rtol=1e-4)

    print("KERNEL_OK")
</pallas_src>

<mosaic_0001>
module attributes {stable_mosaic.version = 11 : i64} {
  func.func @sparse_linear_kernel(%arg0: i32, %arg1: memref<8x600xf32, #tpu.memory_space<vmem>>, %arg2: memref<600x128xf32, #tpu.memory_space<vmem>>, %arg3: memref<1x128xf32, #tpu.memory_space<vmem>>, %arg4: memref<8x128xf32, #tpu.memory_space<vmem>>) attributes {dimension_semantics = [#tpu.dimension_semantics<parallel>], iteration_bounds = array<i64: 1>, scalar_prefetch = 0 : i64, scratch_operands = 0 : i64, tpu.core_type = #tpu.core_type<tc>, window_params = [{transform_indices = @transform_0, window_bounds = array<i64: 8, 600>}, {pipeline_mode = #tpu.pipeline_mode<synchronous>, transform_indices = @transform_1, window_bounds = array<i64: 600, 128>}, {pipeline_mode = #tpu.pipeline_mode<synchronous>, transform_indices = @transform_2, window_bounds = array<i64: 1, 128>}, {transform_indices = @transform_3, window_bounds = array<i64: 8, 128>}]} {
    %c0 = arith.constant 0 : index
    %c0_0 = arith.constant 0 : index
    %0 = vector.load %arg1[%c0, %c0_0] : memref<8x600xf32, #tpu.memory_space<vmem>>, vector<8x600xf32>
    %c0_1 = arith.constant 0 : index
    %c0_2 = arith.constant 0 : index
    %1 = vector.load %arg2[%c0_1, %c0_2] : memref<600x128xf32, #tpu.memory_space<vmem>>, vector<600x128xf32>
    %cst = arith.constant dense<0.000000e+00> : vector<8x128xf32>
    %2 = tpu.matmul %0, %1, %cst {dimension_numbers = #tpu.dot_dimension_numbers<[1], [0], [0], [1], [0, 0, 1, 1], [], []>} : vector<8x600xf32>, vector<600x128xf32>, vector<8x128xf32> -> vector<8x128xf32>
    %c0_3 = arith.constant 0 : index
    %c0_4 = arith.constant 0 : index
    %3 = vector.load %arg3[%c0_3, %c0_4] : memref<1x128xf32, #tpu.memory_space<vmem>>, vector<1x128xf32>
    %4 = vector.broadcast %3 : vector<1x128xf32> to vector<8x128xf32>
    %5 = arith.addf %2, %4 : vector<8x128xf32>
    %c0_5 = arith.constant 0 : index
    %c0_6 = arith.constant 0 : index
    %6 = vector.load %arg4[%c0_5, %c0_6] : memref<8x128xf32, #tpu.memory_space<vmem>>, vector<8x128xf32>
    tpu.vector_store %arg4[%c0_5, %c0_6], %5 {strides = array<i32>} : memref<8x128xf32, #tpu.memory_space<vmem>>, vector<8x128xf32>,
    return
  }
  func.func @transform_0(%arg0: i32) -> (i32, i32) {
    %c0_i32 = arith.constant 0 : i32
    %c0_i32_0 = arith.constant 0 : i32
    return %arg0, %c0_i32 : i32, i32
  }
  func.func @transform_1(%arg0: i32) -> (i32, i32) {
    %c0_i32 = arith.constant 0 : i32
    %c0_i32_0 = arith.constant 0 : i32
    %c0_i32_1 = arith.constant 0 : i32
    return %c0_i32, %c0_i32_0 : i32, i32
  }
  func.func @transform_2(%arg0: i32) -> (i32, i32) {
    %c0_i32 = arith.constant 0 : i32
    %c0_i32_0 = arith.constant 0 : i32
    %c0_i32_1 = arith.constant 0 : i32
    return %c0_i32, %c0_i32_0 : i32, i32
  }
  func.func @transform_3(%arg0: i32) -> (i32, i32) {
    %c0_i32 = arith.constant 0 : i32
    %c0_i32_0 = arith.constant 0 : i32
    return %arg0, %c0_i32 : i32, i32
  }
}

</mosaic_0001>

<llo_original>
// kernel: tpu_custom_call.1
$region0: #{tpu_custom_call.1}
  #allocation0 [shape = 'u32[]', space=smem, size = 0x4, offset = 0x4, fixed_abs, tag = 'smem constant byte address 0x4 - core index']
  #allocation1 [shape = 'u32[144,128]{1,0:T(1,128)}', space=vmem, size = 0x12000, scoped, tag = 'internal scratch']
  %s0 = inlined_call_operand.hbm [shape: f32[8,600], index: 0, kind: input, shape index: {}]
  %s1 = inlined_call_operand.hbm [shape: f32[600,128], index: 1, kind: input, shape index: {}]
  %s2 = inlined_call_operand.vmem [shape: f32[1,128], index: 2, kind: input, shape index: {}]
  %s3 = inlined_call_operand.hbm [shape: f32[8,128], index: 3, kind: output, shape index: {}]
  %s4 = sld [smem:[#allocation0]]
  $region30: #{tpu_custom_call.1} parent=0
    _
  %s6 = ssub.s32 1, %s4
  %s7 = scalar_select 0, %s6, %s4
  $region1: #{tpu_custom_call.1} parent=0
    #allocation2 [shape = 'u8[20480]{0}', space=vmem, size = 0x5000, scoped, tag = 'input window, operand 0, single buffered']
    #allocation3 [shape = 's32[1]{0}', space=sflag, size = 0x4, scoped, tag = 'scoped memory for tpu_custom_call.1']
    #allocation4 [shape = 's32[1]{0}', space=sflag, size = 0x4, scoped, tag = 'scoped memory for tpu_custom_call.1']
    #allocation5 [shape = 'u8[307200]{0}', space=vmem, size = 0x4b000, scoped, tag = 'input window, operand 1, single buffered']
    #allocation6 [shape = 's32[1]{0}', space=sflag, size = 0x4, scoped, tag = 'scoped memory for tpu_custom_call.1']
    #allocation7 [shape = 'u8[4096]{0}', space=vmem, size = 0x1000, scoped, tag = 'output window, operand 0, single buffered']
    %8 = vsyncpa [#allocation3], 0
    %9 = vsyncpa [#allocation6], 0
    %10 = vsyncpa [#allocation4], 0
    // Predicated region
    $region2: #{tpu_custom_call.1} parent=1 // pred_check
      _
    $region3: #{tpu_custom_call.1} parent=1 // pred_check_branch
      %12 = sbr.rel (0) target = $region5
    $region4: #{tpu_custom_call.1} parent=1 // pred_region
      %s14 = ssub.s32 640, 640
      %15 = vsyncadd [#allocation3], %s14
      %s17 = sshll.u32 [#allocation2], 4
      %s18 = int_to_ptr.vmem [resolvable:$true] %s17
      %20 = dma.hbm_to_vmem [thread:$0]  %s0, 640, %s18, [#allocation3]
    $region5: #{tpu_custom_call.1} parent=1 // pred_fallthru
      _
    // Predicated region
    $region6: #{tpu_custom_call.1} parent=1 // pred_check
      _
    $region7: #{tpu_custom_call.1} parent=1 // pred_check_branch
      %22 = sbr.rel (0) target = $region9
    $region8: #{tpu_custom_call.1} parent=1 // pred_region
      %s24 = ssub.s32 9600, 9600
      %25 = vsyncadd [#allocation6], %s24
      %s26 = sshll.u32 [#allocation5], 4
      %s27 = int_to_ptr.vmem [resolvable:$true] %s26
      %32 = dma.hbm_to_vmem [thread:$0]  %s1, 9600, %s27, [#allocation6], 128, 128, 8
    $region9: #{tpu_custom_call.1} parent=1 // pred_fallthru
      _
    // Predicated region
    $region10: #{tpu_custom_call.1} parent=1 // pred_check
      _
    $region11: #{tpu_custom_call.1} parent=1 // pred_check_branch
      %34 = sbr.rel (0) target = $region13
    $region12: #{tpu_custom_call.1} parent=1 // pred_region
      _
    $region13: #{tpu_custom_call.1} parent=1 // pred_fallthru
      _
    // Predicated region
    $region14: #{tpu_custom_call.1} parent=1 // pred_check
      _
    $region15: #{tpu_custom_call.1} parent=1 // pred_check_branch
      %36 = sbr.rel (0) target = $region17
    $region16: #{tpu_custom_call.1} parent=1 // pred_region
      %37 = dma.done [#allocation3], 640
    $region17: #{tpu_custom_call.1} parent=1 // pred_fallthru
      _
    // Predicated region
    $region18: #{tpu_custom_call.1} parent=1 // pred_check
      _
    $region19: #{tpu_custom_call.1} parent=1 // pred_check_branch
      %39 = sbr.rel (0) target = $region21
    $region20: #{tpu_custom_call.1} parent=1 // pred_region
      %40 = dma.done [#allocation6], 9600
    $region21: #{tpu_custom_call.1} parent=1 // pred_fallthru
      _
    %v41 = vld [vmem:[#allocation2] sm:$0xff]
    %v42 = vld [vmem:[#allocation2 + $0x8] sm:$0xff]
    %v43 = vld [vmem:[#allocation2 + $0x10] sm:$0xff]
    %v44 = vld [vmem:[#allocation2 + $0x18] sm:$0xff]
    %v45 = vld [vmem:[#allocation2 + $0x20] sm:$0xff]
    %v46 = vld [vmem:[#allocation5] sm:$0xff]
    %v47 = vld [vmem:[#allocation5 + $0x8] sm:$0xff]
    %v48 = vld [vmem:[#allocation5 + $0x10] sm:$0xff]
    %v49 = vld [vmem:[#allocation5 + $0x18] sm:$0xff]
    %v50 = vld [vmem:[#allocation5 + $0x20] sm:$0xff]
    %v51 = vld [vmem:[#allocation5 + $0x28] sm:$0xff]
    %v52 = vld [vmem:[#allocation5 + $0x30] sm:$0xff]
    %v53 = vld [vmem:[#allocation5 + $0x38] sm:$0xff]
    %v54 = vld [vmem:[#allocation5 + $0x40] sm:$0xff]
    %v55 = vld [vmem:[#allocation5 + $0x48] sm:$0xff]
    %v56 = vld [vmem:[#allocation5 + $0x50] sm:$0xff]
    %v57 = vld [vmem:[#allocation5 + $0x58] sm:$0xff]
    %v58 = vld [vmem:[#allocation5 + $0x60] sm:$0xff]
    %v59 = vld [vmem:[#allocation5 + $0x68] sm:$0xff]
    %v60 = vld [vmem:[#allocation5 + $0x70] sm:$0xff]
    %v61 = vld [vmem:[#allocation5 + $0x78] sm:$0xff]
    %v62 = vld [vmem:[#allocation5 + $0x80] sm:$0xff]
    %v63 = vld [vmem:[#allocation5 + $0x88] sm:$0xff]
    %v64 = vld [vmem:[#allocation5 + $0x90] sm:$0xff]
    %v65 = vld [vmem:[#allocation5 + $0x98] sm:$0xff]
    %v66 = vld [vmem:[#allocation5 + $0xa0] sm:$0xff]
    %v67 = vld [vmem:[#allocation5 + $0xa8] sm:$0xff]
    %v68 = vld [vmem:[#allocation5 + $0xb0] sm:$0xff]
    %v69 = vld [vmem:[#allocation5 + $0xb8] sm:$0xff]
    %v70 = vld [vmem:[#allocation5 + $0xc0] sm:$0xff]
    %v71 = vld [vmem:[#allocation5 + $0xc8] sm:$0xff]
    %v72 = vld [vmem:[#allocation5 + $0xd0] sm:$0xff]
    %v73 = vld [vmem:[#allocation5 + $0xd8] sm:$0xff]
    %v74 = vld [vmem:[#allocation5 + $0xe0] sm:$0xff]
    %v75 = vld [vmem:[#allocation5 + $0xe8] sm:$0xff]
    %v76 = vld [vmem:[#allocation5 + $0xf0] sm:$0xff]
    %v77 = vld [vmem:[#allocation5 + $0xf8] sm:$0xff]
    %v78 = vld [vmem:[#allocation5 + $0x100] sm:$0xff]
    %v79 = vld [vmem:[#allocation5 + $0x108] sm:$0xff]
    %v80 = vld [vmem:[#allocation5 + $0x110] sm:$0xff]
    %v81 = vld [vmem:[#allocation5 + $0x118] sm:$0xff]
    %v82 = vld [vmem:[#allocation5 + $0x120] sm:$0xff]
    %v83 = vld [vmem:[#allocation5 + $0x128] sm:$0xff]
    %v84 = vld [vmem:[#allocation5 + $0x130] sm:$0xff]
    %v85 = vld [vmem:[#allocation5 + $0x138] sm:$0xff]
    %v86 = vld [vmem:[#allocation5 + $0x140] sm:$0xff]
    %v87 = vld [vmem:[#allocation5 + $0x148] sm:$0xff]
    %v88 = vld [vmem:[#allocation5 + $0x150] sm:$0xff]
    %v89 = vld [vmem:[#allocation5 + $0x158] sm:$0xff]
    %v90 = vld [vmem:[#allocation5 + $0x160] sm:$0xff]
    %v91 = vld [vmem:[#allocation5 + $0x168] sm:$0xff]
    %v92 = vld [vmem:[#allocation5 + $0x170] sm:$0xff]
    %v93 = vld [vmem:[#allocation5 + $0x178] sm:$0xff]
    %v94 = vld [vmem:[#allocation5 + $0x180] sm:$0xff]
    %v95 = vld [vmem:[#allocation5 + $0x188] sm:$0xff]
    %v96 = vld [vmem:[#allocation5 + $0x190] sm:$0xff]
    %v97 = vld [vmem:[#allocation5 + $0x198] sm:$0xff]
    %v98 = vld [vmem:[#allocation5 + $0x1a0] sm:$0xff]
    %v99 = vld [vmem:[#allocation5 + $0x1a8] sm:$0xff]
    %v100 = vld [vmem:[#allocation5 + $0x1b0] sm:$0xff]
    %v101 = vld [vmem:[#allocation5 + $0x1b8] sm:$0xff]
    %v102 = vld [vmem:[#allocation5 + $0x1c0] sm:$0xff]
    %v103 = vld [vmem:[#allocation5 + $0x1c8] sm:$0xff]
    %v104 = vld [vmem:[#allocation5 + $0x1d0] sm:$0xff]
    %v105 = vld [vmem:[#allocation5 + $0x1d8] sm:$0xff]
    %v106 = vld [vmem:[#allocation5 + $0x1e0] sm:$0xff]
    %v107 = vld [vmem:[#allocation5 + $0x1e8] sm:$0xff]
    %v108 = vld [vmem:[#allocation5 + $0x1f0] sm:$0xff]
    %v109 = vld [vmem:[#allocation5 + $0x1f8] sm:$0xff]
    %v110 = vld [vmem:[#allocation5 + $0x200] sm:$0xff]
    %v111 = vld [vmem:[#allocation5 + $0x208] sm:$0xff]
    %v112 = vld [vmem:[#allocation5 + $0x210] sm:$0xff]
    %v113 = vld [vmem:[#allocation5 + $0x218] sm:$0xff]
    %v114 = vld [vmem:[#allocation5 + $0x220] sm:$0xff]
    %v115 = vld [vmem:[#allocation5 + $0x228] sm:$0xff]
    %v116 = vld [vmem:[#allocation5 + $0x230] sm:$0xff]
    %v117 = vld [vmem:[#allocation5 + $0x238] sm:$0xff]
    %v118 = vld [vmem:[#allocation5 + $0x240] sm:$0xff]
    %v119 = vld [vmem:[#allocation5 + $0x248] sm:$0xff]
    %v120 = vld [vmem:[#allocation5 + $0x250] sm:$0xff]
    %v121 = vld [vmem:[%s2] sm:$0x1]
    %v123 = vlaneseq
    %v124 = vshrl.u32 %v123, 7
    %v125 = vsub.s32 0, %v124
    %v126 = vrot.slane %v121, %v125
    %vm128 = vcmask 719872
    %v130 = vsel %vm128, %v45, 0
    %132 = vmatprep.subr.mxu0 0.0
    %133 = vmatpush1.msra.mxu0 %v46
    %134 = vmatprep.subr.mxu0 0.0
    %135 = vmatpush1.msra.mxu0 %v47
    %136 = vmatprep.subr.mxu0 0.0
    %137 = vmatpush1.msra.mxu0 %v48
    %138 = vmatprep.subr.mxu0 0.0
    %139 = vmatpush1.msra.mxu0 %v49
    %140 = vmatprep.subr.mxu0 0.0
    %141 = vmatpush1.msra.mxu0 %v50
    %142 = vmatprep.subr.mxu0 0.0
    %143 = vmatpush1.msra.mxu0 %v51
    %144 = vmatprep.subr.mxu0 0.0
    %145 = vmatpush1.msra.mxu0 %v52
    %146 = vmatprep.subr.mxu0 0.0
    %147 = vmatpush1.msra.mxu0 %v53
    %148 = vmatprep.subr.mxu0 0.0
    %149 = vmatpush1.msra.mxu0 %v54
    %150 = vmatprep.subr.mxu0 0.0
    %151 = vmatpush1.msra.mxu0 %v55
    %152 = vmatprep.subr.mxu0 0.0
    %153 = vmatpush1.msra.mxu0 %v56
    %154 = vmatprep.subr.mxu0 0.0
    %155 = vmatpush1.msra.mxu0 %v57
    %156 = vmatprep.subr.mxu0 0.0
    %157 = vmatpush1.msra.mxu0 %v58
    %158 = vmatprep.subr.mxu0 0.0
    %159 = vmatpush1.msra.mxu0 %v59
    %160 = vmatprep.subr.mxu0 0.0
    %161 = vmatpush1.msra.mxu0 %v60
    %162 = vmatprep.subr.mxu0 0.0
    %163 = vmatpush1.msra.mxu0 %v61
    %164 = vmatprep.subr.mxu0 0.0
    %165 = vmatpush1.msra.mxu0 %v62
    %166 = vmatprep.subr.mxu0 0.0
    %167 = vmatpush1.msra.mxu0 %v63
    %168 = vmatprep.subr.mxu0 0.0
    %169 = vmatpush1.msra.mxu0 %v64
    %170 = vmatprep.subr.mxu0 0.0
    %171 = vmatpush1.msra.mxu0 %v65
    %172 = vmatprep.subr.mxu0 0.0
    %173 = vmatpush1.msra.mxu0 %v66
    %174 = vmatprep.subr.mxu0 0.0
    %175 = vmatpush1.msra.mxu0 %v67
    %176 = vmatprep.subr.mxu0 0.0
    %177 = vmatpush1.msra.mxu0 %v68
    %178 = vmatprep.subr.mxu0 0.0
    %179 = vmatpush1.msra.mxu0 %v69
    %180 = vmatprep.subr.mxu0 0.0
    %181 = vmatpush1.msra.mxu0 %v70
    %182 = vmatprep.subr.mxu0 0.0
    %183 = vmatpush1.msra.mxu0 %v71
    %184 = vmatprep.subr.mxu0 0.0
    %185 = vmatpush1.msra.mxu0 %v72
    %186 = vmatprep.subr.mxu0 0.0
    %187 = vmatpush1.msra.mxu0 %v73
    %188 = vmatprep.subr.mxu0 0.0
    %189 = vmatpush1.msra.mxu0 %v74
    %190 = vmatprep.subr.mxu0 0.0
    %191 = vmatpush1.msra.mxu0 %v75
    %192 = vmatprep.subr.mxu0 0.0
    %193 = vmatpush1.msra.mxu0 %v76
    %194 = vmatprep.subr.mxu0 0.0
    %195 = vmatpush1.msra.mxu0 %v77
    %196 = vmatprep.mubr.f32.mxu0 %v42
    %197 = vmatmul.mubr.f32.gmra.mrb[0].mxu0 %v41
    %v198 = vpop.f32.mrb[0].mxu0
    %v199 = vadd.f32 %v126, %v198
    %v200 = vpop.f32.mrb[0].mxu0
    %201 = vdwg.mxu0
    %202 = vmatprep.subr.mxu0 0.0
    %203 = vmatpush1.msra.mxu0 %v78
    %204 = vmatprep.subr.mxu0 0.0
    %205 = vmatpush1.msra.mxu0 %v79
    %206 = vmatprep.subr.mxu0 0.0
    %207 = vmatpush1.msra.mxu0 %v80
    %208 = vmatprep.subr.mxu0 0.0
    %209 = vmatpush1.msra.mxu0 %v81
    %210 = vmatprep.subr.mxu0 0.0
    %211 = vmatpush1.msra.mxu0 %v82
    %212 = vmatprep.subr.mxu0 0.0
    %213 = vmatpush1.msra.mxu0 %v83
    %214 = vmatprep.subr.mxu0 0.0
    %215 = vmatpush1.msra.mxu0 %v84
    %216 = vmatprep.subr.mxu0 0.0
    %217 = vmatpush1.msra.mxu0 %v85
    %218 = vmatprep.subr.mxu0 0.0
    %219 = vmatpush1.msra.mxu0 %v86
    %220 = vmatprep.subr.mxu0 0.0
    %221 = vmatpush1.msra.mxu0 %v87
    %222 = vmatprep.subr.mxu0 0.0
    %223 = vmatpush1.msra.mxu0 %v88
    %224 = vmatprep.subr.mxu0 0.0
    %225 = vmatpush1.msra.mxu0 %v89
    %226 = vmatprep.subr.mxu0 0.0
    %227 = vmatpush1.msra.mxu0 %v90
    %228 = vmatprep.subr.mxu0 0.0
    %229 = vmatpush1.msra.mxu0 %v91
    %230 = vmatprep.subr.mxu0 0.0
    %231 = vmatpush1.msra.mxu0 %v92
    %232 = vmatprep.subr.mxu0 0.0
    %233 = vmatpush1.msra.mxu0 %v93
    %234 = vmatprep.subr.mxu0 0.0
    %235 = vmatpush1.msra.mxu0 %v94
    %236 = vmatprep.subr.mxu0 0.0
    %237 = vmatpush1.msra.mxu0 %v95
    %238 = vmatprep.subr.mxu0 0.0
    %239 = vmatpush1.msra.mxu0 %v96
    %240 = vmatprep.subr.mxu0 0.0
    %241 = vmatpush1.msra.mxu0 %v97
    %242 = vmatprep.subr.mxu0 0.0
    %243 = vmatpush1.msra.mxu0 %v98
    %244 = vmatprep.subr.mxu0 0.0
    %245 = vmatpush1.msra.mxu0 %v99
    %246 = vmatprep.subr.mxu0 0.0
    %247 = vmatpush1.msra.mxu0 %v100
    %248 = vmatprep.subr.mxu0 0.0
    %249 = vmatpush1.msra.mxu0 %v101
    %250 = vmatprep.subr.mxu0 0.0
    %251 = vmatpush1.msra.mxu0 %v102
    %252 = vmatprep.subr.mxu0 0.0
    %253 = vmatpush1.msra.mxu0 %v103
    %254 = vmatprep.subr.mxu0 0.0
    %255 = vmatpush1.msra.mxu0 %v104
    %256 = vmatprep.subr.mxu0 0.0
    %257 = vmatpush1.msra.mxu0 %v105
    %258 = vmatprep.subr.mxu0 0.0
    %259 = vmatpush1.msra.mxu0 %v106
    %260 = vmatprep.subr.mxu0 0.0
    %261 = vmatpush1.msra.mxu0 %v107
    %262 = vmatprep.subr.mxu0 0.0
    %263 = vmatpush1.msra.mxu0 %v108
    %264 = vmatprep.subr.mxu0 0.0
    %265 = vmatpush1.msra.mxu0 %v109
    %266 = vmatprep.mubr.f32.mxu0 %v44
    %267 = vmatmul.mubr.f32.gmra.mrb[0].mxu0 %v43
    %v268 = vpop.f32.mrb[0].mxu0
    %v269 = vadd.f32 %v199, %v268
    %v270 = vpop.f32.mrb[0].mxu0
    %271 = vdwg.mxu0
    %272 = vmatprep.subr.mxu0 0.0
    %273 = vmatpush1.msra.mxu0 %v110
    %274 = vmatprep.subr.mxu0 0.0
    %275 = vmatpush1.msra.mxu0 %v111
    %276 = vmatprep.subr.mxu0 0.0
    %277 = vmatpush1.msra.mxu0 %v112
    %278 = vmatprep.subr.mxu0 0.0
    %279 = vmatpush1.msra.mxu0 %v113
    %280 = vmatprep.subr.mxu0 0.0
    %281 = vmatpush1.msra.mxu0 %v114
    %282 = vmatprep.subr.mxu0 0.0
    %283 = vmatpush1.msra.mxu0 %v115
    %284 = vmatprep.subr.mxu0 0.0
    %285 = vmatpush1.msra.mxu0 %v116
    %286 = vmatprep.subr.mxu0 0.0
    %287 = vmatpush1.msra.mxu0 %v117
    %288 = vmatprep.subr.mxu0 0.0
    %289 = vmatpush1.msra.mxu0 %v118
    %290 = vmatprep.subr.mxu0 0.0
    %291 = vmatpush1.msra.mxu0 %v119
    %292 = vmatprep.subr.mxu0 0.0
    %293 = vmatpush1.msra.mxu0 %v120
    %294 = vmatprep.subr.mxu0 0.0
    %295 = vmatpush1.msra.mxu0 0.0
    %296 = vmatprep.subr.mxu0 0.0
    %297 = vmatpush1.msra.mxu0 0.0
    %298 = vmatprep.subr.mxu0 0.0
    %299 = vmatpush1.msra.mxu0 0.0
    %300 = vmatprep.subr.mxu0 0.0
    %301 = vmatpush1.msra.mxu0 0.0
    %302 = vmatprep.subr.mxu0 0.0
    %303 = vmatpush1.msra.mxu0 0.0
    %304 = vmatprep.subr.mxu0 0.0
    %305 = vmatpush1.msra.mxu0 0.0
    %306 = vmatprep.subr.mxu0 0.0
    %307 = vmatpush1.msra.mxu0 0.0
    %308 = vmatprep.subr.mxu0 0.0
    %309 = vmatpush1.msra.mxu0 0.0
    %310 = vmatprep.subr.mxu0 0.0
    %311 = vmatpush1.msra.mxu0 0.0
    %312 = vmatprep.subr.mxu0 0.0
    %313 = vmatpush1.msra.mxu0 0.0
    %314 = vmatprep.subr.mxu0 0.0
    %315 = vmatpush1.msra.mxu0 0.0
    %316 = vmatprep.subr.mxu0 0.0
    %317 = vmatpush1.msra.mxu0 0.0
    %318 = vmatprep.subr.mxu0 0.0
    %319 = vmatpush1.msra.mxu0 0.0
    %320 = vmatprep.subr.mxu0 0.0
    %321 = vmatpush1.msra.mxu0 0.0
    %322 = vmatprep.subr.mxu0 0.0
    %323 = vmatpush1.msra.mxu0 0.0
    %324 = vmatprep.subr.mxu0 0.0
    %325 = vmatpush1.msra.mxu0 0.0
    %326 = vmatprep.subr.mxu0 0.0
    %327 = vmatpush1.msra.mxu0 0.0
    %328 = vmatprep.subr.mxu0 0.0
    %329 = vmatpush1.msra.mxu0 0.0
    %330 = vmatprep.subr.mxu0 0.0
    %331 = vmatpush1.msra.mxu0 0.0
    %332 = vmatprep.subr.mxu0 0.0
    %333 = vmatpush1.msra.mxu0 0.0
    %334 = vmatprep.subr.mxu0 0.0
    %335 = vmatpush1.msra.mxu0 0.0
    %336 = vmatprep.mubr.f32.mxu0 0.0
    %337 = vmatmul.mubr.f32.gmra.mrb[0].mxu0 %v130
    %v338 = vpop.f32.mrb[0].mxu0
    %v339 = vadd.f32 %v269, %v338
    %v340 = vpop.f32.mrb[0].mxu0
    %341 = vdwg.mxu0
    %342 = vst [vmem:[#allocation7] sm:$0xff] %v339
    // Predicated region
    $region22: #{tpu_custom_call.1} parent=1 // pred_check
      _
    $region23: #{tpu_custom_call.1} parent=1 // pred_check_branch
      %344 = sbr.rel (0) target = $region25
    $region24: #{tpu_custom_call.1} parent=1 // pred_region
      %s346 = ssub.s32 128, 128
      %347 = vsyncadd [#allocation4], %s346
      %s349 = sshll.u32 [#allocation7], 4
      %s350 = int_to_ptr.vmem [resolvable:$true] %s349
      %352 = dma.vmem_to_hbm [thread:$0]  %s350, 128, %s3, [#allocation4]
    $region25: #{tpu_custom_call.1} parent=1 // pred_fallthru
      _
    // Predicated region
    $region26: #{tpu_custom_call.1} parent=1 // pred_check
      _
    $region27: #{tpu_custom_call.1} parent=1 // pred_check_branch
      %354 = sbr.rel (0) target = $region29
    $region28: #{tpu_custom_call.1} parent=1 // pred_region
      %355 = dma.done [#allocation4], 128
    $region29: #{tpu_custom_call.1} parent=1 // pred_fallthru
      _
    %356 = vsyncpa [#allocation3], 1
    %357 = vsyncpa [#allocation6], 1
    %358 = vsyncpa [#allocation4], 1

</llo_original>
